<compile_context>
chip_gen: v5e
topology: v5e:2x2
jax: 0.10.0
libtpu: 0.0.40
codegen_flags: <defaults>
</compile_context>

<pallas_src>
import functools

import jax
import jax.numpy as jnp
from jax.experimental import pallas as pl
from jax.experimental.pallas import tpu as pltpu

GROUPS = 4


# ---------------------------------------------------------------------------
# One-time probe: pltpu.roll sign convention (matches jnp.roll on current
# toolchains; probing keeps the tap/shift pairing correct either way).
# Call eagerly (it is lru_cached) before any jit that uses the DRB kernel.
# ---------------------------------------------------------------------------
@functools.lru_cache(maxsize=None)
def _roll_matches_numpy() -> bool:
    n = 256

    def kernel(x_ref, o_ref):
        o_ref[...] = pltpu.roll(x_ref[...], 1, 1)

    x = jnp.broadcast_to(jnp.arange(n, dtype=jnp.float32), (8, n))
    y = pl.pallas_call(kernel, out_shape=jax.ShapeDtypeStruct((8, n), jnp.float32))(x)
    return bool(y[0, 0] == n - 1)  # jnp.roll(row, 1)[0] == n - 1


# ---------------------------------------------------------------------------
# Tap bookkeeping
# ---------------------------------------------------------------------------
def _tap_shifts(k, H, W, L, roll_like_np):
    """[(tap_index, lane_roll)] s.t. rolled[:, m] == x[:, (m + flat_offset) % L]."""
    p = k // 2
    out = []
    for dy in range(k):
        for dx in range(k):
            s = (dy - p) * W + (dx - p)                 # flat source offset
            shift = (-s) % L if roll_like_np else s % L
            out.append((dy * k + dx, shift))
    return out


def _tap_masks(H, W, k):
    """(k*k, 1, H*W) 0/1 masks: is tap (dy,dx) in-bounds for destination pixel m."""
    p = k // 2
    ys, xs = jnp.meshgrid(jnp.arange(H), jnp.arange(W), indexing="ij")
    ys, xs = ys.reshape(-1), xs.reshape(-1)
    rows = []
    for dy in range(k):
        for dx in range(k):
            ok = ((ys + dy - p >= 0) & (ys + dy - p < H)
                  & (xs + dx - p >= 0) & (xs + dx - p < W))
            rows.append(ok)
    return jnp.stack(rows).astype(jnp.float32).reshape(k * k, 1, H * W)


# ---------------------------------------------------------------------------
# Fused DRB kernel
# ---------------------------------------------------------------------------
def _make_drb_kernel(C, H, W, nb, roll_like_np):
    L = nb * H * W                        # lane axis: nb images, flattened spatial
    taps3 = _tap_shifts(3, H, W, L, roll_like_np)
    taps5 = _tap_shifts(5, H, W, L, roll_like_np)
    c3, c5 = (3 * 3) // 2, (5 * 5) // 2   # center taps: shift 0, all-ones mask

    def kernel(x_ref,
               a1_3, b1_3, mw_3, bd_3, a2_3, b2_3,
               a1_5, b1_5, mw_5, bd_5, a2_5, b2_5,
               wcat, bo, m_out, o_ref):
        # bf16 MXU operand shared by both branches (f32 accumulation below).
        xb = x_ref[...].astype(jnp.bfloat16)                          # (C, L)

        def shuffle_branch(a1, b1, mw, bd, a2, b2, taps, center):
            # grouped 1x1 (channel shuffle folded into a1/b1) + ReLU     -> (C, L)
            h = jnp.dot(a1[...], xb, preferred_element_type=jnp.float32) + b1[...]
            h = jnp.maximum(h, 0.0)
            # depthwise kxk as k*k shifted MACs; border mask pre-folded into mw.
            # Center tap (all-ones mask) seeds the accumulator -- no zeros+add.
            acc = h * mw[center]
            for t, shift in taps:
                if t == center:
                    continue
                acc = acc + pltpu.roll(h, shift, 1) * mw[t]
            d = acc + bd[...]
            # grouped 1x1 + ReLU (bf16 MXU operands, f32 accumulate)
            y = jnp.dot(a2[...], d.astype(jnp.bfloat16),
                        preferred_element_type=jnp.float32) + b2[...]
            return jnp.maximum(y, 0.0)                                # (C, L) f32

        y3 = shuffle_branch(a1_3, b1_3, mw_3, bd_3, a2_3, b2_3, taps3, c3)
        y5 = shuffle_branch(a1_5, b1_5, mw_5, bd_5, a2_5, b2_5, taps5, c5)

        # outConv 3x3 over concat(y3, y5): per tap ONE (C,2C)@(2C,L) bf16 dot; the
        # spatial shift and border mask are applied to the matmul OUTPUT (both
        # commute with channel mixing).  m_out holds 3x3 masks because the outConv
        # itself is 3x3 -- do NOT "fix" it to the 5x5 masks.
        ycat = jnp.concatenate([y3, y5], axis=0).astype(jnp.bfloat16)   # (2C, L)
        acc = jnp.dot(wcat[c3], ycat, preferred_element_type=jnp.float32)  # center
        for t, shift in taps3:
            if t == c3:
                continue
            z = jnp.dot(wcat[t], ycat, preferred_element_type=jnp.float32)
            acc = acc + pltpu.roll(z, shift, 1) * m_out[t]

        o_ref[...] = jnp.clip(acc + bo[...], 0.0, 6.0).astype(o_ref.dtype)

    return kernel


def _replicated_spec(arr):
    nd = arr.ndim
    return pl.BlockSpec(arr.shape, lambda b: (0,) * nd)


def choose_images_per_step(batch):
    """Images per grid step: keep >=2 grid steps when possible (v7x megacore),
    while letting larger batches widen the lane axis per step (amortizes the tiny
    (C,C) matmuls and the ~0.35us fixed cost per grid step on v5e/v6e)."""
    return batch // 2 if (batch >= 2 and batch % 2 == 0) else 1


def drb_forward(x_nchw, kp):
    """Fused DRB forward. x_nchw: (N, C, H, W) float32 (PyTorch layout)."""
    N, C, H, W = x_nchw.shape
    assert C % GROUPS == 0
    HW = H * W                            # ideally a multiple of 128 (lane-dense)
    L = kp["m_out"].shape[-1]             # nb * HW, baked into the prepped params
    assert L % HW == 0 and (N * HW) % L == 0, (N, HW, L)
    nb = L // HW
    n_steps = (N * HW) // L

    kernel = _make_drb_kernel(C, H, W, nb, _roll_matches_numpy())

    s3, s5 = kp["s3"], kp["s5"]
    weights = [
        s3["a1"], s3["b1"], s3["mw"], s3["bd"], s3["a2"], s3["b2"],
        s5["a1"], s5["b1"], s5["mw"], s5["bd"], s5["a2"], s5["b2"],
        kp["wcat"], kp["bo"], kp["m_out"],
    ]

    # Lane-dense channels-first layout (C, N*HW): one XLA transpose on each side;
    # every matmul output and the final store are full-width (unmasked) vst's.
    x_cl = jnp.transpose(x_nchw, (1, 0, 2, 3)).reshape(C, N * HW)

    out = pl.pallas_call(
        kernel,
        out_shape=jax.ShapeDtypeStruct((C, N * HW), x_nchw.dtype),
        grid=(n_steps,),
        in_specs=[pl.BlockSpec((C, L), lambda b: (0, b))]
        + [_replicated_spec(w) for w in weights],
        out_specs=pl.BlockSpec((C, L), lambda b: (0, b)),
        compiler_params=pltpu.CompilerParams(
            dimension_semantics=("parallel",)),   # image blocks across TCs (v7x)
    )(x_cl, *weights)
    return jnp.transpose(out.reshape(C, N, H, W), (1, 0, 2, 3))


# ---------------------------------------------------------------------------
# Parameter preparation (all folding happens once, at weight-prep time)
# ---------------------------------------------------------------------------
def _shuffle_perm(C, g):
    # channel_shuffle(h)[c] == h[perm[c]]
    return jnp.array([(c % g) * (C // g) + c // g for c in range(C)], jnp.int32)


def _block_diag_1x1(w, g, C):
    """PyTorch grouped-1x1 weight (C_out, C_in//g) -> dense (C_in, C_out)."""
    cs = C // g
    dense = jnp.zeros((C, C), w.dtype)
    for gi in range(g):
        blk = w[gi * cs:(gi + 1) * cs, :]            # (C_out/g, C_in/g)
        dense = dense.at[gi * cs:(gi + 1) * cs, gi * cs:(gi + 1) * cs].set(blk.T)
    return dense


def prepare_kernel_params(raw, C, H, W, images_per_step=1):
    """Fold everything that can be folded off the critical path:
       channel shuffle -> permuted first grouped-1x1; grouped 1x1 -> dense bf16
       (C,C) MXU operands; depthwise border masks -> folded into the depthwise
       weights (mw); masks/mw pre-tiled to images_per_step * H * W lanes."""
    g, nb = GROUPS, images_per_step
    perm = _shuffle_perm(C, g)
    m3 = _tap_masks(H, W, 3)
    m5 = _tap_masks(H, W, 5)

    def branch(p, k, masks):
        a1 = _block_diag_1x1(p["w1"], g, C)[:, perm].T      # shuffle folded in
        b1 = p["b1"][perm].reshape(C, 1)
        wd = p["wdw"].reshape(C, k * k).T.reshape(k * k, C, 1)
        mw = jnp.tile(wd * masks, (1, 1, nb))               # (k*k, C, nb*HW)
        bd = p["bdw"].reshape(C, 1)
        a2 = _block_diag_1x1(p["w2"], g, C).T
        b2 = p["b2"].reshape(C, 1)
        return {"a1": a1.astype(jnp.bfloat16), "b1": b1, "mw": mw, "bd": bd,
                "a2": a2.astype(jnp.bfloat16), "b2": b2}

    # outConv weight in tap-major (9, C, 2C) layout: wcat[t] @ concat(y3, y5).
    wcat = jnp.transpose(raw["w_out"], (2, 3, 0, 1)).reshape(9, C, 2 * C)
    return {
        "s3": branch(raw["s3"], 3, m3),
        "s5": branch(raw["s5"], 5, m5),
        "wcat": wcat.astype(jnp.bfloat16),
        "bo": raw["b_out"].reshape(C, 1),
        "m_out": jnp.tile(m3, (1, 1, nb)),      # outConv is 3x3 -> 3x3 masks
    }


def init_raw_params(key, n_features):
    """Synthetic PyTorch-layout weights (deterministic)."""
    C, g = n_features, GROUPS
    ks = iter(jax.random.split(key, 14))

    def branch(k):
        return {
            "w1": 0.1 * jax.random.normal(next(ks), (C, C // g), jnp.float32),
            "b1": 0.01 * jax.random.normal(next(ks), (C,), jnp.float32),
            "wdw": 0.1 * jax.random.normal(next(ks), (C, 1, k, k), jnp.float32),
            "bdw": 0.01 * jax.random.normal(next(ks), (C,), jnp.float32),
            "w2": 0.1 * jax.random.normal(next(ks), (C, C // g), jnp.float32),
            "b2": 0.01 * jax.random.normal(next(ks), (C,), jnp.float32),
        }

    s3, s5 = branch(3), branch(5)
    return {
        "s3": s3, "s5": s5,
        "w_out": 0.1 * jax.random.normal(next(ks), (C, 2 * C, 3, 3), jnp.float32),
        "b_out": 0.01 * jax.random.normal(next(ks), (C,), jnp.float32),
    }


# ---------------------------------------------------------------------------
# Pure-JAX (XLA conv) reference for correctness checking
# ---------------------------------------------------------------------------
def _conv_nchw(x, w, b, *, groups=1, padding=0):
    y = jax.lax.conv_general_dilated(
        x, w, window_strides=(1, 1),
        padding=[(padding, padding), (padding, padding)],
        dimension_numbers=("NCHW", "OIHW", "NCHW"),
        feature_group_count=groups)
    return y + b[None, :, None, None]


def drb_reference(x, raw):
    N, C, H, W = x.shape
    g = GROUPS

    def branch(p, k):
        h = jax.nn.relu(_conv_nchw(x, p["w1"].reshape(C, C // g, 1, 1), p["b1"], groups=g))
        h = h.reshape(N, g, C // g, H, W).transpose(0, 2, 1, 3, 4).reshape(N, C, H, W)
        h = _conv_nchw(h, p["wdw"], p["bdw"], groups=C, padding=k // 2)
        return jax.nn.relu(_conv_nchw(h, p["w2"].reshape(C, C // g, 1, 1), p["b2"], groups=g))

    cat = jnp.concatenate([branch(raw["s3"], 3), branch(raw["s5"], 5)], axis=1)
    return jnp.clip(_conv_nchw(cat, raw["w_out"], raw["b_out"], padding=1), 0.0, 6.0)


if __name__ == "__main__":
    B, C, H, W = 4, 8, 16, 16          # C must be divisible by groups=4

    key = jax.random.PRNGKey(0)
    kx, kw = jax.random.split(key)
    x = jax.random.normal(kx, (B, C, H, W), jnp.float32)   # NCHW like PyTorch

    raw = init_raw_params(kw, C)
    nb = choose_images_per_step(B)                         # B=4 -> 2 imgs/step, 2 steps
    params = prepare_kernel_params(raw, C, H, W, images_per_step=nb)

    _ = _roll_matches_numpy()          # run the tiny probe eagerly, before jit

    out = jax.block_until_ready(jax.jit(drb_forward)(x, params))
    assert out.shape == (B, C, H, W), out.shape
    assert bool(jnp.all(out >= 0.0) & jnp.all(out <= 6.0))   # ReLU6 range

    ref = jax.block_until_ready(jax.jit(drb_reference)(x, raw))
    err = float(jnp.max(jnp.abs(out - ref)))
    tol = 3e-2 * (1.0 + float(jnp.max(jnp.abs(ref))))
    assert err < tol, f"max |pallas - reference| = {err} (tol {tol})"

    print("KERNEL_OK")
</pallas_src>

<mosaic_0001>
module attributes {stable_mosaic.version = 11 : i64} {
  func.func @kernel(%arg0: memref<8x256xf32, #tpu.memory_space<vmem>>, %arg1: memref<8x256xf32, #tpu.memory_space<vmem>>) attributes {dimension_semantics = [], scalar_prefetch = 0 : i64, scratch_operands = 0 : i64, tpu.core_type = #tpu.core_type<tc>} {
    %c0 = arith.constant 0 : index
    %c0_0 = arith.constant 0 : index
    %0 = vector.load %arg0[%c0, %c0_0] : memref<8x256xf32, #tpu.memory_space<vmem>>, vector<8x256xf32>
    %c1_i32 = arith.constant 1 : i32
    %1 = tpu.dynamic_rotate %0 by %c1_i32 dim 1 : vector<8x256xf32>, i32 -> vector<8x256xf32>
    %c0_1 = arith.constant 0 : index
    %c0_2 = arith.constant 0 : index
    %2 = vector.load %arg1[%c0_1, %c0_2] : memref<8x256xf32, #tpu.memory_space<vmem>>, vector<8x256xf32>
    tpu.vector_store %arg1[%c0_1, %c0_2], %1 {strides = array<i32>} : memref<8x256xf32, #tpu.memory_space<vmem>>, vector<8x256xf32>,
    return
  }
}

</mosaic_0001>

<llo_original>
// kernel: tpu_custom_call.1
$region0: #{tpu_custom_call.1}
  #allocation0 [shape = 'u32[]', space=smem, size = 0x4, offset = 0x4, fixed_abs, tag = 'smem constant byte address 0x4 - core index']
  #allocation1 [shape = 'u32[72,128]{1,0:T(1,128)}', space=vmem, size = 0x9000, scoped, tag = 'internal scratch']
  %s0 = inlined_call_operand.hbm [shape: f32[8,256], index: 0, kind: input, shape index: {}]
  %s1 = inlined_call_operand.hbm [shape: f32[8,256], index: 1, kind: output, shape index: {}]
  %s2 = sld [smem:[#allocation0]]
  $region18: #{tpu_custom_call.1} parent=0
    _
  %s4 = ssub.s32 1, %s2
  %s5 = scalar_select 0, %s4, %s2
  $region1: #{tpu_custom_call.1} parent=0
    #allocation2 [shape = 'u8[8192]{0}', space=vmem, size = 0x2000, scoped, tag = 'input window, operand 0, single buffered']
    #allocation3 [shape = 's32[1]{0}', space=sflag, size = 0x4, scoped, tag = 'scoped memory for tpu_custom_call.1']
    #allocation4 [shape = 's32[1]{0}', space=sflag, size = 0x4, scoped, tag = 'scoped memory for tpu_custom_call.1']
    #allocation5 [shape = 'u8[8192]{0}', space=vmem, size = 0x2000, scoped, tag = 'output window, operand 0, single buffered']
    %6 = vsyncpa [#allocation3], 0
    %7 = vsyncpa [#allocation4], 0
    // Predicated region
    $region2: #{tpu_custom_call.1} parent=1 // pred_check
      _
    $region3: #{tpu_custom_call.1} parent=1 // pred_check_branch
      %9 = sbr.rel (0) target = $region5
    $region4: #{tpu_custom_call.1} parent=1 // pred_region
      %11 = vsyncadd [#allocation3], 0
      %s13 = sshll.u32 %s0, 4
      %s14 = int_to_ptr.hbm [resolvable:$true] %s13
      %s15 = sshll.u32 [#allocation2], 4
      %s16 = int_to_ptr.vmem [resolvable:$true] %s15
      %18 = dma.hbm_to_vmem [thread:$0]  %s14, 256, %s16, [#allocation3]
    $region5: #{tpu_custom_call.1} parent=1 // pred_fallthru
      _
    // Predicated region
    $region6: #{tpu_custom_call.1} parent=1 // pred_check
      _
    $region7: #{tpu_custom_call.1} parent=1 // pred_check_branch
      %20 = sbr.rel (0) target = $region9
    $region8: #{tpu_custom_call.1} parent=1 // pred_region
      %22 = dma.done [#allocation3], 256
    $region9: #{tpu_custom_call.1} parent=1 // pred_fallthru
      _
    %v23 = vld [vmem:[#allocation2] sm:$0xff]
    %v24 = vld [vmem:[#allocation2 + $0x8] sm:$0xff]
    %25 = vrot.lane.b32.xlu0 %v23, 1
    %v26 = vpop.permute.xlu0 %25
    %27 = vrot.lane.b32.xlu0 %v24, 1
    %v28 = vpop.permute.xlu0 %27
    %v29 = vlaneseq
    %v30 = vand.u32 %v29, 127
    %vm31 = vcmp.lt.s32.totalorder %v30, 1
    %v32 = vsel %vm31, %v26, %v28
    %v33 = vsel %vm31, %v28, %v26
    %34 = vst [vmem:[#allocation5] sm:$0xff] %v33
    %35 = vst [vmem:[#allocation5 + $0x8] sm:$0xff] %v32
    // Predicated region
    $region10: #{tpu_custom_call.1} parent=1 // pred_check
      _
    $region11: #{tpu_custom_call.1} parent=1 // pred_check_branch
      %37 = sbr.rel (0) target = $region13
    $region12: #{tpu_custom_call.1} parent=1 // pred_region
      %39 = vsyncadd [#allocation4], 0
      %s41 = sshll.u32 [#allocation5], 4
      %s42 = int_to_ptr.vmem [resolvable:$true] %s41
      %s43 = sshll.u32 %s1, 4
      %s44 = int_to_ptr.hbm [resolvable:$true] %s43
      %46 = dma.vmem_to_hbm [thread:$0]  %s42, 256, %s44, [#allocation4]
    $region13: #{tpu_custom_call.1} parent=1 // pred_fallthru
      _
    // Predicated region
    $region14: #{tpu_custom_call.1} parent=1 // pred_check
      _
    $region15: #{tpu_custom_call.1} parent=1 // pred_check_branch
      %48 = sbr.rel (0) target = $region17
    $region16: #{tpu_custom_call.1} parent=1 // pred_region
      %50 = dma.done [#allocation4], 256
    $region17: #{tpu_custom_call.1} parent=1 // pred_fallthru
      _
    %51 = vsyncpa [#allocation3], 1
    %52 = vsyncpa [#allocation4], 1

</llo_original>
